<compile_context>
chip_gen: v7x
topology: tpu7x:2x2x1
jax: 0.10.0
libtpu: 0.0.40
codegen_flags: <defaults>
</compile_context>

<pallas_src>
import jax
import jax.numpy as jnp
from jax.experimental import pallas as pl
from jax.experimental.pallas import tpu as pltpu

_LANE = 128
_NEG_BIG = -1e30  # finite "minus infinity" for padded logits (exp underflows to 0)


def _round_up(x, m):
    return ((x + m - 1) // m) * m


def _ppo_actor_kernel(obs_ref, w1_ref, b1_ref, w2_ref, b2_ref, out_ref):
    # obs_ref: (TB, OBS) f32      w1_ref: (OBS, HID)      bf16
    # b1_ref:  (1, HID)  f32      w2_ref: (HID, ACT_PAD)  bf16 (zero-padded cols)
    # b2_ref:  (1, ACT_PAD) f32 (-1e30 in padded cols)    out_ref: (TB, ACT_PAD) f32

    # extractor: Linear + ReLU  (f32 MXU matmul; weights upcast from bf16-at-rest)
    w1 = w1_ref[...].astype(jnp.float32)
    hid = jnp.dot(obs_ref[...], w1, preferred_element_type=jnp.float32)
    hid = jnp.maximum(hid + b1_ref[...], 0.0)

    # actor head: Linear into a lane-dense 128-wide logit tile
    w2 = w2_ref[...].astype(jnp.float32)
    logits = jnp.dot(hid, w2, preferred_element_type=jnp.float32) + b2_ref[...]

    # Softmax(dim=-1), numerically stable.  Padded columns carry -1e30 bias,
    # so exp() underflows to exactly 0 there and real columns sum to 1.
    m = jnp.max(logits, axis=-1, keepdims=True)
    e = jnp.exp(logits - m)
    denom = jnp.sum(e, axis=-1, keepdims=True)
    out_ref[...] = (e / denom).astype(out_ref.dtype)


def prepare_params(w1, b1, w2, b2):
    """Pack raw (in_features, out_features) weights for the kernel.

    (For torch.nn.Linear weights of shape (out, in), pass weight.T.)
    The actor head is padded to a 128-wide, lane-dense output: w2 columns are
    zero-padded, the padded bias entries get -1e30 so softmax assigns them 0.
    Weights are stored bf16 at rest (halves weight DMA); biases stay f32.
    """
    obs_dim, hid = w1.shape
    act = w2.shape[1]
    act_pad = _round_up(act, _LANE)
    w2p = jnp.pad(w2.astype(jnp.float32), ((0, 0), (0, act_pad - act)))
    b2p = jnp.pad(jnp.reshape(b2, (1, act)).astype(jnp.float32),
                  ((0, 0), (0, act_pad - act)), constant_values=_NEG_BIG)
    return {
        "w1": w1.astype(jnp.bfloat16),
        "b1": jnp.reshape(b1, (1, hid)).astype(jnp.float32),
        "w2p": w2p.astype(jnp.bfloat16),
        "b2p": b2p,
        "action_dim": act,
    }


def ppo_actor_forward(obs, params, state=None, *, batch_tile=2048):
    """Returns (action_probs, state), mirroring PPOActor.forward."""
    w1, b1, w2p, b2p = params["w1"], params["b1"], params["w2p"], params["b2p"]
    act = params["action_dim"]
    B, obs_dim = obs.shape
    hid = w1.shape[1]
    act_pad = w2p.shape[1]

    # Batch tile: one tile covering all of B when it fits (single grid step ->
    # no per-step overhead on single-core chips), capped at `batch_tile` rows
    # so huge batches still pipeline and v7x's two TCs share the parallel axis.
    tb = min(_round_up(max(B, 1), 8), _round_up(max(batch_tile, 8), 8))
    b_pad = _round_up(max(B, 1), tb)

    obs_in = obs
    if b_pad != B:  # only pad when B isn't already tile-aligned
        obs_in = jnp.pad(obs, ((0, b_pad - B), (0, 0)))

    grid = (b_pad // tb,)

    cost = pl.CostEstimate(
        flops=2 * b_pad * (obs_dim * hid + hid * act_pad),
        transcendentals=b_pad * act_pad,
        bytes_accessed=(b_pad * obs_dim * 4          # obs (f32)
                        + obs_dim * hid * 2          # w1 (bf16)
                        + hid * act_pad * 2          # w2 (bf16, padded)
                        + hid * 4 + act_pad * 4      # biases (f32)
                        + b_pad * act_pad * 4),      # out (f32, lane-dense)
    )

    out = pl.pallas_call(
        _ppo_actor_kernel,
        out_shape=jax.ShapeDtypeStruct((b_pad, act_pad), jnp.float32),
        grid_spec=pltpu.PrefetchScalarGridSpec(
            num_scalar_prefetch=0,
            grid=grid,
            in_specs=[
                pl.BlockSpec((tb, obs_dim), lambda i: (i, 0)),     # obs tile
                pl.BlockSpec((obs_dim, hid), lambda i: (0, 0)),    # W1 (resident)
                pl.BlockSpec((1, hid), lambda i: (0, 0)),          # b1
                pl.BlockSpec((hid, act_pad), lambda i: (0, 0)),    # W2 (resident, padded)
                pl.BlockSpec((1, act_pad), lambda i: (0, 0)),      # b2 (padded, -1e30)
            ],
            out_specs=pl.BlockSpec((tb, act_pad), lambda i: (i, 0)),
        ),
        compiler_params=pltpu.CompilerParams(
            dimension_semantics=("parallel",)),
        cost_estimate=cost,
    )(obs_in, w1, b1, w2p, b2p)

    probs = out[:B, :act]   # drop batch padding and the 128-lane head padding
    return probs, state


if __name__ == "__main__":
    key = jax.random.PRNGKey(0)
    k_obs, k1, k2, k3, k4 = jax.random.split(key, 5)

    # B deliberately not a power-of-two; small net consistent with the module.
    B, OBS_DIM, HIDDEN, ACTION_DIM = 200, 32, 32, 8
    obs = jax.random.normal(k_obs, (B, OBS_DIM), jnp.float32)

    # deterministic small-scale init (synthetic; not a checkpoint load)
    w1 = jax.random.normal(k1, (OBS_DIM, HIDDEN), jnp.float32) * 0.1
    b1 = jax.random.normal(k2, (HIDDEN,), jnp.float32) * 0.01
    w2 = jax.random.normal(k3, (HIDDEN, ACTION_DIM), jnp.float32) * 0.1
    b2 = jax.random.normal(k4, (ACTION_DIM,), jnp.float32) * 0.01

    params = prepare_params(w1, b1, w2, b2)

    probs, state = ppo_actor_forward(obs, params, state=None)
    probs = jax.block_until_ready(probs)

    # sanity: shape, state passthrough, finite, rows sum to 1
    assert probs.shape == (B, ACTION_DIM)
    assert state is None
    assert bool(jnp.all(jnp.isfinite(probs)))
    assert bool(jnp.allclose(jnp.sum(probs, axis=-1), 1.0, atol=1e-3))

    # reference check against plain JAX (weights bf16-rounded once, all math f32)
    w1_f = params["w1"].astype(jnp.float32)
    w2_f = params["w2p"][:, :ACTION_DIM].astype(jnp.float32)
    feat = jnp.maximum(obs @ w1_f + params["b1"], 0.0)
    logits = feat @ w2_f + b2.reshape(1, -1)
    ref = jax.nn.softmax(logits, axis=-1)
    max_err = float(jnp.max(jnp.abs(probs - ref)))
    assert bool(jnp.allclose(probs, ref, atol=2e-3)), max_err

    print("KERNEL_OK")
</pallas_src>

<mosaic_0001>
module attributes {stable_mosaic.version = 11 : i64} {
  func.func @_ppo_actor_kernel(%arg0: i32, %arg1: memref<200x32xf32, #tpu.memory_space<vmem>>, %arg2: memref<32x32xbf16, #tpu.memory_space<vmem>>, %arg3: memref<1x32xf32, #tpu.memory_space<vmem>>, %arg4: memref<32x128xbf16, #tpu.memory_space<vmem>>, %arg5: memref<1x128xf32, #tpu.memory_space<vmem>>, %arg6: memref<200x128xf32, #tpu.memory_space<vmem>>) attributes {dimension_semantics = [#tpu.dimension_semantics<parallel>], iteration_bounds = array<i64: 1>, scalar_prefetch = 0 : i64, scratch_operands = 0 : i64, tpu.core_type = #tpu.core_type<tc>, window_params = [{transform_indices = @transform_0, window_bounds = array<i64: 200, 32>}, {pipeline_mode = #tpu.pipeline_mode<synchronous>, transform_indices = @transform_1, window_bounds = array<i64: 32, 32>}, {pipeline_mode = #tpu.pipeline_mode<synchronous>, transform_indices = @transform_2, window_bounds = array<i64: 1, 32>}, {pipeline_mode = #tpu.pipeline_mode<synchronous>, transform_indices = @transform_3, window_bounds = array<i64: 32, 128>}, {pipeline_mode = #tpu.pipeline_mode<synchronous>, transform_indices = @transform_4, window_bounds = array<i64: 1, 128>}, {transform_indices = @transform_5, window_bounds = array<i64: 200, 128>}]} {
    %c0 = arith.constant 0 : index
    %c0_0 = arith.constant 0 : index
    %0 = vector.load %arg2[%c0, %c0_0] : memref<32x32xbf16, #tpu.memory_space<vmem>>, vector<32x32xbf16>
    %1 = arith.extf %0 : vector<32x32xbf16> to vector<32x32xf32>
    %c0_1 = arith.constant 0 : index
    %c0_2 = arith.constant 0 : index
    %2 = vector.load %arg1[%c0_1, %c0_2] : memref<200x32xf32, #tpu.memory_space<vmem>>, vector<200x32xf32>
    %cst = arith.constant dense<0.000000e+00> : vector<200x32xf32>
    %3 = tpu.matmul %2, %1, %cst {dimension_numbers = #tpu.dot_dimension_numbers<[1], [0], [0], [1], [0, 0, 1, 1], [], []>} : vector<200x32xf32>, vector<32x32xf32>, vector<200x32xf32> -> vector<200x32xf32>
    %c0_3 = arith.constant 0 : index
    %c0_4 = arith.constant 0 : index
    %4 = vector.load %arg3[%c0_3, %c0_4] : memref<1x32xf32, #tpu.memory_space<vmem>>, vector<1x32xf32>
    %5 = vector.broadcast %4 : vector<1x32xf32> to vector<200x32xf32>
    %6 = arith.addf %3, %5 : vector<200x32xf32>
    %cst_5 = arith.constant 0.000000e+00 : f32
    %7 = vector.broadcast %cst_5 : f32 to vector<200x32xf32>
    %8 = arith.maximumf %6, %7 : vector<200x32xf32>
    %c0_6 = arith.constant 0 : index
    %c0_7 = arith.constant 0 : index
    %9 = vector.load %arg4[%c0_6, %c0_7] : memref<32x128xbf16, #tpu.memory_space<vmem>>, vector<32x128xbf16>
    %10 = arith.extf %9 : vector<32x128xbf16> to vector<32x128xf32>
    %cst_8 = arith.constant dense<0.000000e+00> : vector<200x128xf32>
    %11 = tpu.matmul %8, %10, %cst_8 {dimension_numbers = #tpu.dot_dimension_numbers<[1], [0], [0], [1], [0, 0, 1, 1], [], []>} : vector<200x32xf32>, vector<32x128xf32>, vector<200x128xf32> -> vector<200x128xf32>
    %c0_9 = arith.constant 0 : index
    %c0_10 = arith.constant 0 : index
    %12 = vector.load %arg5[%c0_9, %c0_10] : memref<1x128xf32, #tpu.memory_space<vmem>>, vector<1x128xf32>
    %13 = vector.broadcast %12 : vector<1x128xf32> to vector<200x128xf32>
    %14 = arith.addf %11, %13 : vector<200x128xf32>
    %cst_11 = arith.constant dense<0xFF800000> : vector<200xf32>
    %15 = vector.multi_reduction <maximumf>, %14, %cst_11 [1] : vector<200x128xf32> to vector<200xf32>
    %16 = vector.shape_cast %15 : vector<200xf32> to vector<200x1xf32>
    %17 = vector.broadcast %16 : vector<200x1xf32> to vector<200x128xf32>
    %18 = arith.subf %14, %17 : vector<200x128xf32>
    %19 = math.exp %18 : vector<200x128xf32>
    %cst_12 = arith.constant dense<0.000000e+00> : vector<200xf32>
    %20 = vector.multi_reduction <add>, %19, %cst_12 [1] : vector<200x128xf32> to vector<200xf32>
    %21 = vector.shape_cast %20 : vector<200xf32> to vector<200x1xf32>
    %22 = vector.broadcast %21 : vector<200x1xf32> to vector<200x128xf32>
    %23 = arith.divf %19, %22 : vector<200x128xf32>
    %c0_13 = arith.constant 0 : index
    %c0_14 = arith.constant 0 : index
    %24 = vector.load %arg6[%c0_13, %c0_14] : memref<200x128xf32, #tpu.memory_space<vmem>>, vector<200x128xf32>
    tpu.vector_store %arg6[%c0_13, %c0_14], %23 {strides = array<i32>} : memref<200x128xf32, #tpu.memory_space<vmem>>, vector<200x128xf32>,
    return
  }
  func.func @transform_0(%arg0: i32) -> (i32, i32) {
    %c0_i32 = arith.constant 0 : i32
    %c0_i32_0 = arith.constant 0 : i32
    return %arg0, %c0_i32 : i32, i32
  }
  func.func @transform_1(%arg0: i32) -> (i32, i32) {
    %c0_i32 = arith.constant 0 : i32
    %c0_i32_0 = arith.constant 0 : i32
    %c0_i32_1 = arith.constant 0 : i32
    return %c0_i32, %c0_i32_0 : i32, i32
  }
  func.func @transform_2(%arg0: i32) -> (i32, i32) {
    %c0_i32 = arith.constant 0 : i32
    %c0_i32_0 = arith.constant 0 : i32
    %c0_i32_1 = arith.constant 0 : i32
    return %c0_i32, %c0_i32_0 : i32, i32
  }
  func.func @transform_3(%arg0: i32) -> (i32, i32) {
    %c0_i32 = arith.constant 0 : i32
    %c0_i32_0 = arith.constant 0 : i32
    %c0_i32_1 = arith.constant 0 : i32
    return %c0_i32, %c0_i32_0 : i32, i32
  }
  func.func @transform_4(%arg0: i32) -> (i32, i32) {
    %c0_i32 = arith.constant 0 : i32
    %c0_i32_0 = arith.constant 0 : i32
    %c0_i32_1 = arith.constant 0 : i32
    return %c0_i32, %c0_i32_0 : i32, i32
  }
  func.func @transform_5(%arg0: i32) -> (i32, i32) {
    %c0_i32 = arith.constant 0 : i32
    %c0_i32_0 = arith.constant 0 : i32
    return %arg0, %c0_i32 : i32, i32
  }
}

</mosaic_0001>

<llo_original>
// kernel: tpu_custom_call.1
$region0: #{tpu_custom_call.1}
  #allocation0 [shape = 'u32[]', space=smem, size = 0x4, offset = 0x4, fixed_abs, tag = 'smem constant byte address 0x4 - core index']
  #allocation1 [shape = 'u32[144,128]{1,0:T(1,128)}', space=vmem, size = 0x12000, scoped, tag = 'internal scratch']
  %s0 = inlined_call_operand.vmem [shape: f32[200,32], index: 0, kind: input, shape index: {}]
  %s1 = inlined_call_operand.vmem [shape: bf16[32,32], index: 1, kind: input, shape index: {}]
  %s2 = inlined_call_operand.vmem [shape: f32[1,32], index: 2, kind: input, shape index: {}]
  %s3 = inlined_call_operand.vmem [shape: bf16[32,128], index: 3, kind: input, shape index: {}]
  %s4 = inlined_call_operand.vmem [shape: f32[1,128], index: 4, kind: input, shape index: {}]
  %s5 = inlined_call_operand.hbm [shape: f32[200,128], index: 5, kind: output, shape index: {}]
  %s6 = sld [smem:[#allocation0]]
  $region30: #{tpu_custom_call.1} parent=0
    _
  %s8 = ssub.s32 1, %s6
  %s9 = scalar_select 0, %s8, %s6
  $region1: #{tpu_custom_call.1} parent=0
    #allocation2 [shape = 'u8[102400]{0}', space=vmem, size = 0x19000, scoped, tag = 'output window, operand 0, single buffered']
    #allocation3 [shape = 's32[1]{0}', space=sflag, size = 0x4, scoped, tag = 'scoped memory for tpu_custom_call.1']
    %10 = vsyncpa [#allocation3], 0
    // Predicated region
    $region2: #{tpu_custom_call.1} parent=1 // pred_check
      _
    $region3: #{tpu_custom_call.1} parent=1 // pred_check_branch
      %12 = sbr.rel (0) target = $region5
    $region4: #{tpu_custom_call.1} parent=1 // pred_region
      _
    $region5: #{tpu_custom_call.1} parent=1 // pred_fallthru
      _
    // Predicated region
    $region6: #{tpu_custom_call.1} parent=1 // pred_check
      _
    $region7: #{tpu_custom_call.1} parent=1 // pred_check_branch
      %14 = sbr.rel (0) target = $region9
    $region8: #{tpu_custom_call.1} parent=1 // pred_region
      _
    $region9: #{tpu_custom_call.1} parent=1 // pred_fallthru
      _
    // Predicated region
    $region10: #{tpu_custom_call.1} parent=1 // pred_check
      _
    $region11: #{tpu_custom_call.1} parent=1 // pred_check_branch
      %16 = sbr.rel (0) target = $region13
    $region12: #{tpu_custom_call.1} parent=1 // pred_region
      _
    $region13: #{tpu_custom_call.1} parent=1 // pred_fallthru
      _
    // Predicated region
    $region14: #{tpu_custom_call.1} parent=1 // pred_check
      _
    $region15: #{tpu_custom_call.1} parent=1 // pred_check_branch
      %18 = sbr.rel (0) target = $region17
    $region16: #{tpu_custom_call.1} parent=1 // pred_region
      _
    $region17: #{tpu_custom_call.1} parent=1 // pred_fallthru
      _
    // Predicated region
    $region18: #{tpu_custom_call.1} parent=1 // pred_check
      _
    $region19: #{tpu_custom_call.1} parent=1 // pred_check_branch
      %20 = sbr.rel (0) target = $region21
    $region20: #{tpu_custom_call.1} parent=1 // pred_region
      _
    $region21: #{tpu_custom_call.1} parent=1 // pred_fallthru
      _
    %v21 = vld [vmem:[%s1] sm:$0xf]
    %v22 = vld [vmem:[%s1 + $0x4] sm:$0xf]
    %v23 = vld [vmem:[%s1 + $0x8] sm:$0xf]
    %v24 = vld [vmem:[%s1 + $0xc] sm:$0xf]
    %v25 = vunpack.c.l.bf16 %v21
    %v26 = vunpack.c.l.bf16 %v22
    %v27 = vunpack.c.l.bf16 %v23
    %v28 = vunpack.c.l.bf16 %v24
    %v29 = vld [vmem:[%s0] sm:$0xff]
    %v30 = vld [vmem:[%s0 + $0x8] sm:$0xff]
    %v31 = vld [vmem:[%s0 + $0x10] sm:$0xff]
    %v32 = vld [vmem:[%s0 + $0x18] sm:$0xff]
    %v33 = vld [vmem:[%s0 + $0x20] sm:$0xff]
    %v34 = vld [vmem:[%s0 + $0x28] sm:$0xff]
    %v35 = vld [vmem:[%s0 + $0x30] sm:$0xff]
    %v36 = vld [vmem:[%s0 + $0x38] sm:$0xff]
    %v37 = vld [vmem:[%s0 + $0x40] sm:$0xff]
    %v38 = vld [vmem:[%s0 + $0x48] sm:$0xff]
    %v39 = vld [vmem:[%s0 + $0x50] sm:$0xff]
    %v40 = vld [vmem:[%s0 + $0x58] sm:$0xff]
    %v41 = vld [vmem:[%s0 + $0x60] sm:$0xff]
    %v42 = vld [vmem:[%s0 + $0x68] sm:$0xff]
    %v43 = vld [vmem:[%s0 + $0x70] sm:$0xff]
    %v44 = vld [vmem:[%s0 + $0x78] sm:$0xff]
    %v45 = vld [vmem:[%s0 + $0x80] sm:$0xff]
    %v46 = vld [vmem:[%s0 + $0x88] sm:$0xff]
    %v47 = vld [vmem:[%s0 + $0x90] sm:$0xff]
    %v48 = vld [vmem:[%s0 + $0x98] sm:$0xff]
    %v49 = vld [vmem:[%s0 + $0xa0] sm:$0xff]
    %v50 = vld [vmem:[%s0 + $0xa8] sm:$0xff]
    %v51 = vld [vmem:[%s0 + $0xb0] sm:$0xff]
    %v52 = vld [vmem:[%s0 + $0xb8] sm:$0xff]
    %v53 = vld [vmem:[%s0 + $0xc0] sm:$0xff]
    %v54 = vld [vmem:[%s2] sm:$0x1]
    %v56 = vlaneseq
    %v57 = vshrl.u32 %v56, 7
    %v58 = vsub.s32 0, %v57
    %v59 = vrot.slane %v54, %v58
    %vm61 = vcmask 261120
    %v63 = vsel %vm61, %v29, 0
    %v66 = vsel %vm61, %v30, 0
    %v69 = vsel %vm61, %v31, 0
    %v72 = vsel %vm61, %v32, 0
    %v75 = vsel %vm61, %v33, 0
    %v78 = vsel %vm61, %v34, 0
    %v81 = vsel %vm61, %v35, 0
    %v84 = vsel %vm61, %v36, 0
    %v87 = vsel %vm61, %v37, 0
    %v90 = vsel %vm61, %v38, 0
    %v93 = vsel %vm61, %v39, 0
    %v96 = vsel %vm61, %v40, 0
    %v99 = vsel %vm61, %v41, 0
    %v102 = vsel %vm61, %v42, 0
    %v105 = vsel %vm61, %v43, 0
    %v108 = vsel %vm61, %v44, 0
    %v111 = vsel %vm61, %v45, 0
    %v114 = vsel %vm61, %v46, 0
    %v117 = vsel %vm61, %v47, 0
    %v120 = vsel %vm61, %v48, 0
    %v123 = vsel %vm61, %v49, 0
    %v126 = vsel %vm61, %v50, 0
    %v129 = vsel %vm61, %v51, 0
    %v132 = vsel %vm61, %v52, 0
    %v135 = vsel %vm61, %v53, 0
    %137 = vmatprep.subr.mxu0 0.0
    %138 = vmatpush1.msra.mxu0 %v25
    %139 = vmatprep.subr.mxu0 0.0
    %140 = vmatpush1.msra.mxu0 %v26
    %141 = vmatprep.subr.mxu0 0.0
    %142 = vmatpush1.msra.mxu0 %v27
    %143 = vmatprep.subr.mxu0 0.0
    %144 = vmatpush1.msra.mxu0 %v28
    %145 = vmatprep.subr.mxu0 0.0
    %146 = vmatpush1.msra.mxu0 0.0
    %147 = vmatprep.subr.mxu0 0.0
    %148 = vmatpush1.msra.mxu0 0.0
    %149 = vmatprep.subr.mxu0 0.0
    %150 = vmatpush1.msra.mxu0 0.0
    %151 = vmatprep.subr.mxu0 0.0
    %152 = vmatpush1.msra.mxu0 0.0
    %153 = vmatprep.subr.mxu0 0.0
    %154 = vmatpush1.msra.mxu0 0.0
    %155 = vmatprep.subr.mxu0 0.0
    %156 = vmatpush1.msra.mxu0 0.0
    %157 = vmatprep.subr.mxu0 0.0
    %158 = vmatpush1.msra.mxu0 0.0
    %159 = vmatprep.subr.mxu0 0.0
    %160 = vmatpush1.msra.mxu0 0.0
    %161 = vmatprep.subr.mxu0 0.0
    %162 = vmatpush1.msra.mxu0 0.0
    %163 = vmatprep.subr.mxu0 0.0
    %164 = vmatpush1.msra.mxu0 0.0
    %165 = vmatprep.subr.mxu0 0.0
    %166 = vmatpush1.msra.mxu0 0.0
    %167 = vmatprep.subr.mxu0 0.0
    %168 = vmatpush1.msra.mxu0 0.0
    %169 = vmatprep.subr.mxu0 0.0
    %170 = vmatpush1.msra.mxu0 0.0
    %171 = vmatprep.subr.mxu0 0.0
    %172 = vmatpush1.msra.mxu0 0.0
    %173 = vmatprep.subr.mxu0 0.0
    %174 = vmatpush1.msra.mxu0 0.0
    %175 = vmatprep.subr.mxu0 0.0
    %176 = vmatpush1.msra.mxu0 0.0
    %177 = vmatprep.subr.mxu0 0.0
    %178 = vmatpush1.msra.mxu0 0.0
    %179 = vmatprep.subr.mxu0 0.0
    %180 = vmatpush1.msra.mxu0 0.0
    %181 = vmatprep.subr.mxu0 0.0
    %182 = vmatpush1.msra.mxu0 0.0
    %183 = vmatprep.subr.mxu0 0.0
    %184 = vmatpush1.msra.mxu0 0.0
    %185 = vmatprep.subr.mxu0 0.0
    %186 = vmatpush1.msra.mxu0 0.0
    %187 = vmatprep.subr.mxu0 0.0
    %188 = vmatpush1.msra.mxu0 0.0
    %189 = vmatprep.subr.mxu0 0.0
    %190 = vmatpush1.msra.mxu0 0.0
    %191 = vmatprep.subr.mxu0 0.0
    %192 = vmatpush1.msra.mxu0 0.0
    %193 = vmatprep.subr.mxu0 0.0
    %194 = vmatpush1.msra.mxu0 0.0
    %195 = vmatprep.subr.mxu0 0.0
    %196 = vmatpush1.msra.mxu0 0.0
    %197 = vmatprep.subr.mxu0 0.0
    %198 = vmatpush1.msra.mxu0 0.0
    %199 = vmatprep.subr.mxu0 0.0
    %200 = vmatpush1.msra.mxu0 0.0
    %201 = vmatprep.mubr.f32.mxu0 0.0
    %202 = vmatmul.mubr.f32.gmra.mrb[0].mxu0 %v63
    %v203 = vpop.f32.mrb[0].mxu0
    %v204 = vadd.f32 %v59, %v203
    %v205 = vpop.f32.mrb[0].mxu0
    %206 = vmatprep.mubr.f32.mxu0 0.0
    %207 = vmatmul.mubr.f32.gmra.mrb[0].mxu0 %v66
    %v208 = vpop.f32.mrb[0].mxu0
    %v209 = vadd.f32 %v59, %v208
    %v210 = vpop.f32.mrb[0].mxu0
    %211 = vmatprep.mubr.f32.mxu0 0.0
    %212 = vmatmul.mubr.f32.gmra.mrb[0].mxu0 %v69
    %v213 = vpop.f32.mrb[0].mxu0
    %v214 = vadd.f32 %v59, %v213
    %v215 = vpop.f32.mrb[0].mxu0
    %216 = vmatprep.mubr.f32.mxu0 0.0
    %217 = vmatmul.mubr.f32.gmra.mrb[0].mxu0 %v72
    %v218 = vpop.f32.mrb[0].mxu0
    %v219 = vadd.f32 %v59, %v218
    %v220 = vpop.f32.mrb[0].mxu0
    %221 = vmatprep.mubr.f32.mxu0 0.0
    %222 = vmatmul.mubr.f32.gmra.mrb[0].mxu0 %v75
    %v223 = vpop.f32.mrb[0].mxu0
    %v224 = vadd.f32 %v59, %v223
    %v225 = vpop.f32.mrb[0].mxu0
    %226 = vmatprep.mubr.f32.mxu0 0.0
    %227 = vmatmul.mubr.f32.gmra.mrb[0].mxu0 %v78
    %v228 = vpop.f32.mrb[0].mxu0
    %v229 = vadd.f32 %v59, %v228
    %v230 = vpop.f32.mrb[0].mxu0
    %231 = vmatprep.mubr.f32.mxu0 0.0
    %232 = vmatmul.mubr.f32.gmra.mrb[0].mxu0 %v81
    %v233 = vpop.f32.mrb[0].mxu0
    %v234 = vadd.f32 %v59, %v233
    %v235 = vpop.f32.mrb[0].mxu0
    %236 = vmatprep.mubr.f32.mxu0 0.0
    %237 = vmatmul.mubr.f32.gmra.mrb[0].mxu0 %v84
    %v238 = vpop.f32.mrb[0].mxu0
    %v239 = vadd.f32 %v59, %v238
    %v240 = vpop.f32.mrb[0].mxu0
    %241 = vmatprep.mubr.f32.mxu0 0.0
    %242 = vmatmul.mubr.f32.gmra.mrb[0].mxu0 %v87
    %v243 = vpop.f32.mrb[0].mxu0
    %v244 = vadd.f32 %v59, %v243
    %v245 = vpop.f32.mrb[0].mxu0
    %246 = vmatprep.mubr.f32.mxu0 0.0
    %247 = vmatmul.mubr.f32.gmra.mrb[0].mxu0 %v90
    %v248 = vpop.f32.mrb[0].mxu0
    %v249 = vadd.f32 %v59, %v248
    %v250 = vpop.f32.mrb[0].mxu0
    %251 = vmatprep.mubr.f32.mxu0 0.0
    %252 = vmatmul.mubr.f32.gmra.mrb[0].mxu0 %v93
    %v253 = vpop.f32.mrb[0].mxu0
    %v254 = vadd.f32 %v59, %v253
    %v255 = vpop.f32.mrb[0].mxu0
    %256 = vmatprep.mubr.f32.mxu0 0.0
    %257 = vmatmul.mubr.f32.gmra.mrb[0].mxu0 %v96
    %v258 = vpop.f32.mrb[0].mxu0
    %v259 = vadd.f32 %v59, %v258
    %v260 = vpop.f32.mrb[0].mxu0
    %261 = vmatprep.mubr.f32.mxu0 0.0
    %262 = vmatmul.mubr.f32.gmra.mrb[0].mxu0 %v99
    %v263 = vpop.f32.mrb[0].mxu0
    %v264 = vadd.f32 %v59, %v263
    %v265 = vpop.f32.mrb[0].mxu0
    %266 = vmatprep.mubr.f32.mxu0 0.0
    %267 = vmatmul.mubr.f32.gmra.mrb[0].mxu0 %v102
    %v268 = vpop.f32.mrb[0].mxu0
    %v269 = vadd.f32 %v59, %v268
    %v270 = vpop.f32.mrb[0].mxu0
    %271 = vmatprep.mubr.f32.mxu0 0.0
    %272 = vmatmul.mubr.f32.gmra.mrb[0].mxu0 %v105
    %v273 = vpop.f32.mrb[0].mxu0
    %v274 = vadd.f32 %v59, %v273
    %v275 = vpop.f32.mrb[0].mxu0
    %276 = vmatprep.mubr.f32.mxu0 0.0
    %277 = vmatmul.mubr.f32.gmra.mrb[0].mxu0 %v108
    %v278 = vpop.f32.mrb[0].mxu0
    %v279 = vadd.f32 %v59, %v278
    %v280 = vpop.f32.mrb[0].mxu0
    %281 = vmatprep.mubr.f32.mxu0 0.0
    %282 = vmatmul.mubr.f32.gmra.mrb[0].mxu0 %v111
    %v283 = vpop.f32.mrb[0].mxu0
    %v284 = vadd.f32 %v59, %v283
    %v285 = vpop.f32.mrb[0].mxu0
    %286 = vmatprep.mubr.f32.mxu0 0.0
    %287 = vmatmul.mubr.f32.gmra.mrb[0].mxu0 %v114
    %v288 = vpop.f32.mrb[0].mxu0
    %v289 = vadd.f32 %v59, %v288
    %v290 = vpop.f32.mrb[0].mxu0
    %291 = vmatprep.mubr.f32.mxu0 0.0
    %292 = vmatmul.mubr.f32.gmra.mrb[0].mxu0 %v117
    %v293 = vpop.f32.mrb[0].mxu0
    %v294 = vadd.f32 %v59, %v293
    %v295 = vpop.f32.mrb[0].mxu0
    %296 = vmatprep.mubr.f32.mxu0 0.0
    %297 = vmatmul.mubr.f32.gmra.mrb[0].mxu0 %v120
    %v298 = vpop.f32.mrb[0].mxu0
    %v299 = vadd.f32 %v59, %v298
    %v300 = vpop.f32.mrb[0].mxu0
    %301 = vmatprep.mubr.f32.mxu0 0.0
    %302 = vmatmul.mubr.f32.gmra.mrb[0].mxu0 %v123
    %v303 = vpop.f32.mrb[0].mxu0
    %v304 = vadd.f32 %v59, %v303
    %v305 = vpop.f32.mrb[0].mxu0
    %306 = vmatprep.mubr.f32.mxu0 0.0
    %307 = vmatmul.mubr.f32.gmra.mrb[0].mxu0 %v126
    %v308 = vpop.f32.mrb[0].mxu0
    %v309 = vadd.f32 %v59, %v308
    %v310 = vpop.f32.mrb[0].mxu0
    %311 = vmatprep.mubr.f32.mxu0 0.0
    %312 = vmatmul.mubr.f32.gmra.mrb[0].mxu0 %v129
    %v313 = vpop.f32.mrb[0].mxu0
    %v314 = vadd.f32 %v59, %v313
    %v315 = vpop.f32.mrb[0].mxu0
    %316 = vmatprep.mubr.f32.mxu0 0.0
    %317 = vmatmul.mubr.f32.gmra.mrb[0].mxu0 %v132
    %v318 = vpop.f32.mrb[0].mxu0
    %v319 = vadd.f32 %v59, %v318
    %v320 = vpop.f32.mrb[0].mxu0
    %321 = vmatprep.mubr.f32.mxu0 0.0
    %322 = vmatmul.mubr.f32.gmra.mrb[0].mxu0 %v135
    %v323 = vpop.f32.mrb[0].mxu0
    %v324 = vadd.f32 %v59, %v323
    %v325 = vpop.f32.mrb[0].mxu0
    %326 = vdwg.mxu0
    %v327 = vmax.f32 %v204, 0.0
    %v328 = vmax.f32 %v209, 0.0
    %v329 = vmax.f32 %v214, 0.0
    %v330 = vmax.f32 %v219, 0.0
    %v331 = vmax.f32 %v224, 0.0
    %v332 = vmax.f32 %v229, 0.0
    %v333 = vmax.f32 %v234, 0.0
    %v334 = vmax.f32 %v239, 0.0
    %v335 = vmax.f32 %v244, 0.0
    %v336 = vmax.f32 %v249, 0.0
    %v337 = vmax.f32 %v254, 0.0
    %v338 = vmax.f32 %v259, 0.0
    %v339 = vmax.f32 %v264, 0.0
    %v340 = vmax.f32 %v269, 0.0
    %v341 = vmax.f32 %v274, 0.0
    %v342 = vmax.f32 %v279, 0.0
    %v343 = vmax.f32 %v284, 0.0
    %v344 = vmax.f32 %v289, 0.0
    %v345 = vmax.f32 %v294, 0.0
    %v346 = vmax.f32 %v299, 0.0
    %v347 = vmax.f32 %v304, 0.0
    %v348 = vmax.f32 %v309, 0.0
    %v349 = vmax.f32 %v314, 0.0
    %v350 = vmax.f32 %v319, 0.0
    %v351 = vmax.f32 %v324, 0.0
    %v352 = vld [vmem:[%s3] sm:$0xf]
    %v353 = vld [vmem:[%s3 + $0x4] sm:$0xf]
    %v354 = vld [vmem:[%s3 + $0x8] sm:$0xf]
    %v355 = vld [vmem:[%s3 + $0xc] sm:$0xf]
    %v356 = vunpack.c.l.bf16 %v352
    %v357 = vunpack.c.l.bf16 %v353
    %v358 = vunpack.c.l.bf16 %v354
    %v359 = vunpack.c.l.bf16 %v355
    %v360 = vld [vmem:[%s4] sm:$0x1]
    %v362 = vlaneseq
    %v363 = vshrl.u32 %v362, 7
    %v364 = vsub.s32 0, %v363
    %v365 = vrot.slane %v360, %v364
    %v368 = vsel %vm61, %v327, 0
    %v371 = vsel %vm61, %v328, 0
    %v374 = vsel %vm61, %v329, 0
    %v377 = vsel %vm61, %v330, 0
    %v380 = vsel %vm61, %v331, 0
    %v383 = vsel %vm61, %v332, 0
    %v386 = vsel %vm61, %v333, 0
    %v389 = vsel %vm61, %v334, 0
    %v392 = vsel %vm61, %v335, 0
    %v395 = vsel %vm61, %v336, 0
    %v398 = vsel %vm61, %v337, 0
    %v401 = vsel %vm61, %v338, 0
    %v404 = vsel %vm61, %v339, 0
    %v407 = vsel %vm61, %v340, 0
    %v410 = vsel %vm61, %v341, 0
    %v413 = vsel %vm61, %v342, 0
    %v416 = vsel %vm61, %v343, 0
    %v419 = vsel %vm61, %v344, 0
    %v422 = vsel %vm61, %v345, 0
    %v425 = vsel %vm61, %v346, 0
    %v428 = vsel %vm61, %v347, 0
    %v431 = vsel %vm61, %v348, 0
    %v434 = vsel %vm61, %v349, 0
    %v437 = vsel %vm61, %v350, 0
    %v440 = vsel %vm61, %v351, 0
    %442 = vmatprep.subr.mxu0 0.0
    %443 = vmatpush1.msra.mxu0 %v356
    %444 = vmatprep.subr.mxu0 0.0
    %445 = vmatpush1.msra.mxu0 %v357
    %446 = vmatprep.subr.mxu0 0.0
    %447 = vmatpush1.msra.mxu0 %v358
    %448 = vmatprep.subr.mxu0 0.0
    %449 = vmatpush1.msra.mxu0 %v359
    %450 = vmatprep.subr.mxu0 0.0
    %451 = vmatpush1.msra.mxu0 0.0
    %452 = vmatprep.subr.mxu0 0.0
    %453 = vmatpush1.msra.mxu0 0.0
    %454 = vmatprep.subr.mxu0 0.0
    %455 = vmatpush1.msra.mxu0 0.0
    %456 = vmatprep.subr.mxu0 0.0
    %457 = vmatpush1.msra.mxu0 0.0
    %458 = vmatprep.subr.mxu0 0.0
    %459 = vmatpush1.msra.mxu0 0.0
    %460 = vmatprep.subr.mxu0 0.0
    %461 = vmatpush1.msra.mxu0 0.0
    %462 = vmatprep.subr.mxu0 0.0
    %463 = vmatpush1.msra.mxu0 0.0
    %464 = vmatprep.subr.mxu0 0.0
    %465 = vmatpush1.msra.mxu0 0.0
    %466 = vmatprep.subr.mxu0 0.0
    %467 = vmatpush1.msra.mxu0 0.0
    %468 = vmatprep.subr.mxu0 0.0
    %469 = vmatpush1.msra.mxu0 0.0
    %470 = vmatprep.subr.mxu0 0.0
    %471 = vmatpush1.msra.mxu0 0.0
    %472 = vmatprep.subr.mxu0 0.0
    %473 = vmatpush1.msra.mxu0 0.0
    %474 = vmatprep.subr.mxu0 0.0
    %475 = vmatpush1.msra.mxu0 0.0
    %476 = vmatprep.subr.mxu0 0.0
    %477 = vmatpush1.msra.mxu0 0.0
    %478 = vmatprep.subr.mxu0 0.0
    %479 = vmatpush1.msra.mxu0 0.0
    %480 = vmatprep.subr.mxu0 0.0
    %481 = vmatpush1.msra.mxu0 0.0
    %482 = vmatprep.subr.mxu0 0.0
    %483 = vmatpush1.msra.mxu0 0.0
    %484 = vmatprep.subr.mxu0 0.0
    %485 = vmatpush1.msra.mxu0 0.0
    %486 = vmatprep.subr.mxu0 0.0
    %487 = vmatpush1.msra.mxu0 0.0
    %488 = vmatprep.subr.mxu0 0.0
    %489 = vmatpush1.msra.mxu0 0.0
    %490 = vmatprep.subr.mxu0 0.0
    %491 = vmatpush1.msra.mxu0 0.0
    %492 = vmatprep.subr.mxu0 0.0
    %493 = vmatpush1.msra.mxu0 0.0
    %494 = vmatprep.subr.mxu0 0.0
    %495 = vmatpush1.msra.mxu0 0.0
    %496 = vmatprep.subr.mxu0 0.0
    %497 = vmatpush1.msra.mxu0 0.0
    %498 = vmatprep.subr.mxu0 0.0
    %499 = vmatpush1.msra.mxu0 0.0
    %500 = vmatprep.subr.mxu0 0.0
    %501 = vmatpush1.msra.mxu0 0.0
    %502 = vmatprep.subr.mxu0 0.0
    %503 = vmatpush1.msra.mxu0 0.0
    %504 = vmatprep.subr.mxu0 0.0
    %505 = vmatpush1.msra.mxu0 0.0
    %506 = vmatprep.mubr.f32.mxu0 0.0
    %507 = vmatmul.mubr.f32.gmra.mrb[0].mxu0 %v368
    %v508 = vpop.f32.mrb[0].mxu0
    %v509 = vadd.f32 %v365, %v508
    %v510 = vpop.f32.mrb[0].mxu0
    %511 = vmatprep.mubr.f32.mxu0 0.0
    %512 = vmatmul.mubr.f32.gmra.mrb[0].mxu0 %v371
    %v513 = vpop.f32.mrb[0].mxu0
    %v514 = vadd.f32 %v365, %v513
    %v515 = vpop.f32.mrb[0].mxu0
    %516 = vmatprep.mubr.f32.mxu0 0.0
    %517 = vmatmul.mubr.f32.gmra.mrb[0].mxu0 %v374
    %v518 = vpop.f32.mrb[0].mxu0
    %v519 = vadd.f32 %v365, %v518
    %v520 = vpop.f32.mrb[0].mxu0
    %521 = vmatprep.mubr.f32.mxu0 0.0
    %522 = vmatmul.mubr.f32.gmra.mrb[0].mxu0 %v377
    %v523 = vpop.f32.mrb[0].mxu0
    %v524 = vadd.f32 %v365, %v523
    %v525 = vpop.f32.mrb[0].mxu0
    %526 = vmatprep.mubr.f32.mxu0 0.0
    %527 = vmatmul.mubr.f32.gmra.mrb[0].mxu0 %v380
    %v528 = vpop.f32.mrb[0].mxu0
    %v529 = vadd.f32 %v365, %v528
    %v530 = vpop.f32.mrb[0].mxu0
    %531 = vmatprep.mubr.f32.mxu0 0.0
    %532 = vmatmul.mubr.f32.gmra.mrb[0].mxu0 %v383
    %v533 = vpop.f32.mrb[0].mxu0
    %v534 = vadd.f32 %v365, %v533
    %v535 = vpop.f32.mrb[0].mxu0
    %536 = vmatprep.mubr.f32.mxu0 0.0
    %537 = vmatmul.mubr.f32.gmra.mrb[0].mxu0 %v386
    %v538 = vpop.f32.mrb[0].mxu0
    %v539 = vadd.f32 %v365, %v538
    %v540 = vpop.f32.mrb[0].mxu0
    %541 = vmatprep.mubr.f32.mxu0 0.0
    %542 = vmatmul.mubr.f32.gmra.mrb[0].mxu0 %v389
    %v543 = vpop.f32.mrb[0].mxu0
    %v544 = vadd.f32 %v365, %v543
    %v545 = vpop.f32.mrb[0].mxu0
    %546 = vmatprep.mubr.f32.mxu0 0.0
    %547 = vmatmul.mubr.f32.gmra.mrb[0].mxu0 %v392
    %v548 = vpop.f32.mrb[0].mxu0
    %v549 = vadd.f32 %v365, %v548
    %v550 = vpop.f32.mrb[0].mxu0
    %551 = vmatprep.mubr.f32.mxu0 0.0
    %552 = vmatmul.mubr.f32.gmra.mrb[0].mxu0 %v395
    %v553 = vpop.f32.mrb[0].mxu0
    %v554 = vadd.f32 %v365, %v553
    %v555 = vpop.f32.mrb[0].mxu0
    %556 = vmatprep.mubr.f32.mxu0 0.0
    %557 = vmatmul.mubr.f32.gmra.mrb[0].mxu0 %v398
    %v558 = vpop.f32.mrb[0].mxu0
    %v559 = vadd.f32 %v365, %v558
    %v560 = vpop.f32.mrb[0].mxu0
    %561 = vmatprep.mubr.f32.mxu0 0.0
    %562 = vmatmul.mubr.f32.gmra.mrb[0].mxu0 %v401
    %v563 = vpop.f32.mrb[0].mxu0
    %v564 = vadd.f32 %v365, %v563
    %v565 = vpop.f32.mrb[0].mxu0
    %566 = vmatprep.mubr.f32.mxu0 0.0
    %567 = vmatmul.mubr.f32.gmra.mrb[0].mxu0 %v404
    %v568 = vpop.f32.mrb[0].mxu0
    %v569 = vadd.f32 %v365, %v568
    %v570 = vpop.f32.mrb[0].mxu0
    %571 = vmatprep.mubr.f32.mxu0 0.0
    %572 = vmatmul.mubr.f32.gmra.mrb[0].mxu0 %v407
    %v573 = vpop.f32.mrb[0].mxu0
    %v574 = vadd.f32 %v365, %v573
    %v575 = vpop.f32.mrb[0].mxu0
    %576 = vmatprep.mubr.f32.mxu0 0.0
    %577 = vmatmul.mubr.f32.gmra.mrb[0].mxu0 %v410
    %v578 = vpop.f32.mrb[0].mxu0
    %v579 = vadd.f32 %v365, %v578
    %v580 = vpop.f32.mrb[0].mxu0
    %581 = vmatprep.mubr.f32.mxu0 0.0
    %582 = vmatmul.mubr.f32.gmra.mrb[0].mxu0 %v413
    %v583 = vpop.f32.mrb[0].mxu0
    %v584 = vadd.f32 %v365, %v583
    %v585 = vpop.f32.mrb[0].mxu0
    %586 = vmatprep.mubr.f32.mxu0 0.0
    %587 = vmatmul.mubr.f32.gmra.mrb[0].mxu0 %v416
    %v588 = vpop.f32.mrb[0].mxu0
    %v589 = vadd.f32 %v365, %v588
    %v590 = vpop.f32.mrb[0].mxu0
    %591 = vmatprep.mubr.f32.mxu0 0.0
    %592 = vmatmul.mubr.f32.gmra.mrb[0].mxu0 %v419
    %v593 = vpop.f32.mrb[0].mxu0
    %v594 = vadd.f32 %v365, %v593
    %v595 = vpop.f32.mrb[0].mxu0
    %596 = vmatprep.mubr.f32.mxu0 0.0
    %597 = vmatmul.mubr.f32.gmra.mrb[0].mxu0 %v422
    %v598 = vpop.f32.mrb[0].mxu0
    %v599 = vadd.f32 %v365, %v598
    %v600 = vpop.f32.mrb[0].mxu0
    %601 = vmatprep.mubr.f32.mxu0 0.0
    %602 = vmatmul.mubr.f32.gmra.mrb[0].mxu0 %v425
    %v603 = vpop.f32.mrb[0].mxu0
    %v604 = vadd.f32 %v365, %v603
    %v605 = vpop.f32.mrb[0].mxu0
    %606 = vmatprep.mubr.f32.mxu0 0.0
    %607 = vmatmul.mubr.f32.gmra.mrb[0].mxu0 %v428
    %v608 = vpop.f32.mrb[0].mxu0
    %v609 = vadd.f32 %v365, %v608
    %v610 = vpop.f32.mrb[0].mxu0
    %611 = vmatprep.mubr.f32.mxu0 0.0
    %612 = vmatmul.mubr.f32.gmra.mrb[0].mxu0 %v431
    %v613 = vpop.f32.mrb[0].mxu0
    %v614 = vadd.f32 %v365, %v613
    %v615 = vpop.f32.mrb[0].mxu0
    %616 = vmatprep.mubr.f32.mxu0 0.0
    %617 = vmatmul.mubr.f32.gmra.mrb[0].mxu0 %v434
    %v618 = vpop.f32.mrb[0].mxu0
    %v619 = vadd.f32 %v365, %v618
    %v620 = vpop.f32.mrb[0].mxu0
    %621 = vmatprep.mubr.f32.mxu0 0.0
    %622 = vmatmul.mubr.f32.gmra.mrb[0].mxu0 %v437
    %v623 = vpop.f32.mrb[0].mxu0
    %v624 = vadd.f32 %v365, %v623
    %v625 = vpop.f32.mrb[0].mxu0
    %626 = vmatprep.mubr.f32.mxu0 0.0
    %627 = vmatmul.mubr.f32.gmra.mrb[0].mxu0 %v440
    %v628 = vpop.f32.mrb[0].mxu0
    %v629 = vadd.f32 %v365, %v628
    %v630 = vpop.f32.mrb[0].mxu0
    %631 = vdwg.mxu0
    %632 = vmax.xlane.f32.xlu0 %v509
    %v633 = vpop.xlane.xlu0 %632
    %634 = vmax.xlane.f32.xlu0 %v514
    %v635 = vpop.xlane.xlu0 %634
    %636 = vmax.xlane.f32.xlu0 %v519
    %v637 = vpop.xlane.xlu0 %636
    %638 = vmax.xlane.f32.xlu0 %v524
    %v639 = vpop.xlane.xlu0 %638
    %640 = vmax.xlane.f32.xlu0 %v529
    %v641 = vpop.xlane.xlu0 %640
    %642 = vmax.xlane.f32.xlu0 %v534
    %v643 = vpop.xlane.xlu0 %642
    %644 = vmax.xlane.f32.xlu0 %v539
    %v645 = vpop.xlane.xlu0 %644
    %646 = vmax.xlane.f32.xlu0 %v544
    %v647 = vpop.xlane.xlu0 %646
    %648 = vmax.xlane.f32.xlu0 %v549
    %v649 = vpop.xlane.xlu0 %648
    %650 = vmax.xlane.f32.xlu0 %v554
    %v651 = vpop.xlane.xlu0 %650
    %652 = vmax.xlane.f32.xlu0 %v559
    %v653 = vpop.xlane.xlu0 %652
    %654 = vmax.xlane.f32.xlu0 %v564
    %v655 = vpop.xlane.xlu0 %654
    %656 = vmax.xlane.f32.xlu0 %v569
    %v657 = vpop.xlane.xlu0 %656
    %658 = vmax.xlane.f32.xlu0 %v574
    %v659 = vpop.xlane.xlu0 %658
    %660 = vmax.xlane.f32.xlu0 %v579
    %v661 = vpop.xlane.xlu0 %660
    %662 = vmax.xlane.f32.xlu0 %v584
    %v663 = vpop.xlane.xlu0 %662
    %664 = vmax.xlane.f32.xlu0 %v589
    %v665 = vpop.xlane.xlu0 %664
    %666 = vmax.xlane.f32.xlu0 %v594
    %v667 = vpop.xlane.xlu0 %666
    %668 = vmax.xlane.f32.xlu0 %v599
    %v669 = vpop.xlane.xlu0 %668
    %670 = vmax.xlane.f32.xlu0 %v604
    %v671 = vpop.xlane.xlu0 %670
    %672 = vmax.xlane.f32.xlu0 %v609
    %v673 = vpop.xlane.xlu0 %672
    %674 = vmax.xlane.f32.xlu0 %v614
    %v675 = vpop.xlane.xlu0 %674
    %676 = vmax.xlane.f32.xlu0 %v619
    %v677 = vpop.xlane.xlu0 %676
    %678 = vmax.xlane.f32.xlu0 %v624
    %v679 = vpop.xlane.xlu0 %678
    %680 = vmax.xlane.f32.xlu0 %v629
    %v681 = vpop.xlane.xlu0 %680
    %v682 = vsub.f32 %v509, %v633
    %v683 = vsub.f32 %v514, %v635
    %v684 = vsub.f32 %v519, %v637
    %v685 = vsub.f32 %v524, %v639
    %v686 = vsub.f32 %v529, %v641
    %v687 = vsub.f32 %v534, %v643
    %v688 = vsub.f32 %v539, %v645
    %v689 = vsub.f32 %v544, %v647
    %v690 = vsub.f32 %v549, %v649
    %v691 = vsub.f32 %v554, %v651
    %v692 = vsub.f32 %v559, %v653
    %v693 = vsub.f32 %v564, %v655
    %v694 = vsub.f32 %v569, %v657
    %v695 = vsub.f32 %v574, %v659
    %v696 = vsub.f32 %v579, %v661
    %v697 = vsub.f32 %v584, %v663
    %v698 = vsub.f32 %v589, %v665
    %v699 = vsub.f32 %v594, %v667
    %v700 = vsub.f32 %v599, %v669
    %v701 = vsub.f32 %v604, %v671
    %v702 = vsub.f32 %v609, %v673
    %v703 = vsub.f32 %v614, %v675
    %v704 = vsub.f32 %v619, %v677
    %v705 = vsub.f32 %v624, %v679
    %v706 = vsub.f32 %v629, %v681
    %v707 = vmul.f32 %v682, 1.442695
    %v708 = vpow.pop %v707
    %v709 = vmul.f32 %v683, 1.442695
    %v710 = vpow.pop %v709
    %v711 = vmul.f32 %v684, 1.442695
    %v712 = vpow.pop %v711
    %v713 = vmul.f32 %v685, 1.442695
    %v714 = vpow.pop %v713
    %v715 = vmul.f32 %v686, 1.442695
    %v716 = vpow.pop %v715
    %v717 = vmul.f32 %v687, 1.442695
    %v718 = vpow.pop %v717
    %v719 = vmul.f32 %v688, 1.442695
    %v720 = vpow.pop %v719
    %v721 = vmul.f32 %v689, 1.442695
    %v722 = vpow.pop %v721
    %v723 = vmul.f32 %v690, 1.442695
    %v724 = vpow.pop %v723
    %v725 = vmul.f32 %v691, 1.442695
    %v726 = vpow.pop %v725
    %v727 = vmul.f32 %v692, 1.442695
    %v728 = vpow.pop %v727
    %v729 = vmul.f32 %v693, 1.442695
    %v730 = vpow.pop %v729
    %v731 = vmul.f32 %v694, 1.442695
    %v732 = vpow.pop %v731
    %v733 = vmul.f32 %v695, 1.442695
    %v734 = vpow.pop %v733
    %v735 = vmul.f32 %v696, 1.442695
    %v736 = vpow.pop %v735
    %v737 = vmul.f32 %v697, 1.442695
    %v738 = vpow.pop %v737
    %v739 = vmul.f32 %v698, 1.442695
    %v740 = vpow.pop %v739
    %v741 = vmul.f32 %v699, 1.442695
    %v742 = vpow.pop %v741
    %v743 = vmul.f32 %v700, 1.442695
    %v744 = vpow.pop %v743
    %v745 = vmul.f32 %v701, 1.442695
    %v746 = vpow.pop %v745
    %v747 = vmul.f32 %v702, 1.442695
    %v748 = vpow.pop %v747
    %v749 = vmul.f32 %v703, 1.442695
    %v750 = vpow.pop %v749
    %v751 = vmul.f32 %v704, 1.442695
    %v752 = vpow.pop %v751
    %v753 = vmul.f32 %v705, 1.442695
    %v754 = vpow.pop %v753
    %v755 = vmul.f32 %v706, 1.442695
    %v756 = vpow.pop %v755
    %757 = vadd.xlane.f32.xlu0 %v708
    %v758 = vpop.xlane.xlu0 %757
    %759 = vadd.xlane.f32.xlu0 %v710
    %v760 = vpop.xlane.xlu0 %759
    %761 = vadd.xlane.f32.xlu0 %v712
    %v762 = vpop.xlane.xlu0 %761
    %763 = vadd.xlane.f32.xlu0 %v714
    %v764 = vpop.xlane.xlu0 %763
    %765 = vadd.xlane.f32.xlu0 %v716
    %v766 = vpop.xlane.xlu0 %765
    %767 = vadd.xlane.f32.xlu0 %v718
    %v768 = vpop.xlane.xlu0 %767
    %769 = vadd.xlane.f32.xlu0 %v720
    %v770 = vpop.xlane.xlu0 %769
    %771 = vadd.xlane.f32.xlu0 %v722
    %v772 = vpop.xlane.xlu0 %771
    %773 = vadd.xlane.f32.xlu0 %v724
    %v774 = vpop.xlane.xlu0 %773
    %775 = vadd.xlane.f32.xlu0 %v726
    %v776 = vpop.xlane.xlu0 %775
    %777 = vadd.xlane.f32.xlu0 %v728
    %v778 = vpop.xlane.xlu0 %777
    %779 = vadd.xlane.f32.xlu0 %v730
    %v780 = vpop.xlane.xlu0 %779
    %781 = vadd.xlane.f32.xlu0 %v732
    %v782 = vpop.xlane.xlu0 %781
    %783 = vadd.xlane.f32.xlu0 %v734
    %v784 = vpop.xlane.xlu0 %783
    %785 = vadd.xlane.f32.xlu0 %v736
    %v786 = vpop.xlane.xlu0 %785
    %787 = vadd.xlane.f32.xlu0 %v738
    %v788 = vpop.xlane.xlu0 %787
    %789 = vadd.xlane.f32.xlu0 %v740
    %v790 = vpop.xlane.xlu0 %789
    %791 = vadd.xlane.f32.xlu0 %v742
    %v792 = vpop.xlane.xlu0 %791
    %793 = vadd.xlane.f32.xlu0 %v744
    %v794 = vpop.xlane.xlu0 %793
    %795 = vadd.xlane.f32.xlu0 %v746
    %v796 = vpop.xlane.xlu0 %795
    %797 = vadd.xlane.f32.xlu0 %v748
    %v798 = vpop.xlane.xlu0 %797
    %799 = vadd.xlane.f32.xlu0 %v750
    %v800 = vpop.xlane.xlu0 %799
    %801 = vadd.xlane.f32.xlu0 %v752
    %v802 = vpop.xlane.xlu0 %801
    %803 = vadd.xlane.f32.xlu0 %v754
    %v804 = vpop.xlane.xlu0 %803
    %805 = vadd.xlane.f32.xlu0 %v756
    %v806 = vpop.xlane.xlu0 %805
    %v807 = vrcp.pop %v758
    %v808 = vmul.f32 %v708, %v807
    %v809 = vrcp.pop %v760
    %v810 = vmul.f32 %v710, %v809
    %v811 = vrcp.pop %v762
    %v812 = vmul.f32 %v712, %v811
    %v813 = vrcp.pop %v764
    %v814 = vmul.f32 %v714, %v813
    %v815 = vrcp.pop %v766
    %v816 = vmul.f32 %v716, %v815
    %v817 = vrcp.pop %v768
    %v818 = vmul.f32 %v718, %v817
    %v819 = vrcp.pop %v770
    %v820 = vmul.f32 %v720, %v819
    %v821 = vrcp.pop %v772
    %v822 = vmul.f32 %v722, %v821
    %v823 = vrcp.pop %v774
    %v824 = vmul.f32 %v724, %v823
    %v825 = vrcp.pop %v776
    %v826 = vmul.f32 %v726, %v825
    %v827 = vrcp.pop %v778
    %v828 = vmul.f32 %v728, %v827
    %v829 = vrcp.pop %v780
    %v830 = vmul.f32 %v730, %v829
    %v831 = vrcp.pop %v782
    %v832 = vmul.f32 %v732, %v831
    %v833 = vrcp.pop %v784
    %v834 = vmul.f32 %v734, %v833
    %v835 = vrcp.pop %v786
    %v836 = vmul.f32 %v736, %v835
    %v837 = vrcp.pop %v788
    %v838 = vmul.f32 %v738, %v837
    %v839 = vrcp.pop %v790
    %v840 = vmul.f32 %v740, %v839
    %v841 = vrcp.pop %v792
    %v842 = vmul.f32 %v742, %v841
    %v843 = vrcp.pop %v794
    %v844 = vmul.f32 %v744, %v843
    %v845 = vrcp.pop %v796
    %v846 = vmul.f32 %v746, %v845
    %v847 = vrcp.pop %v798
    %v848 = vmul.f32 %v748, %v847
    %v849 = vrcp.pop %v800
    %v850 = vmul.f32 %v750, %v849
    %v851 = vrcp.pop %v802
    %v852 = vmul.f32 %v752, %v851
    %v853 = vrcp.pop %v804
    %v854 = vmul.f32 %v754, %v853
    %v855 = vrcp.pop %v806
    %v856 = vmul.f32 %v756, %v855
    %857 = vst [vmem:[#allocation2] sm:$0xff] %v808
    %858 = vst [vmem:[#allocation2 + $0x8] sm:$0xff] %v810
    %859 = vst [vmem:[#allocation2 + $0x10] sm:$0xff] %v812
    %860 = vst [vmem:[#allocation2 + $0x18] sm:$0xff] %v814
    %861 = vst [vmem:[#allocation2 + $0x20] sm:$0xff] %v816
    %862 = vst [vmem:[#allocation2 + $0x28] sm:$0xff] %v818
    %863 = vst [vmem:[#allocation2 + $0x30] sm:$0xff] %v820
    %864 = vst [vmem:[#allocation2 + $0x38] sm:$0xff] %v822
    %865 = vst [vmem:[#allocation2 + $0x40] sm:$0xff] %v824
    %866 = vst [vmem:[#allocation2 + $0x48] sm:$0xff] %v826
    %867 = vst [vmem:[#allocation2 + $0x50] sm:$0xff] %v828
    %868 = vst [vmem:[#allocation2 + $0x58] sm:$0xff] %v830
    %869 = vst [vmem:[#allocation2 + $0x60] sm:$0xff] %v832
    %870 = vst [vmem:[#allocation2 + $0x68] sm:$0xff] %v834
    %871 = vst [vmem:[#allocation2 + $0x70] sm:$0xff] %v836
    %872 = vst [vmem:[#allocation2 + $0x78] sm:$0xff] %v838
    %873 = vst [vmem:[#allocation2 + $0x80] sm:$0xff] %v840
    %874 = vst [vmem:[#allocation2 + $0x88] sm:$0xff] %v842
    %875 = vst [vmem:[#allocation2 + $0x90] sm:$0xff] %v844
    %876 = vst [vmem:[#allocation2 + $0x98] sm:$0xff] %v846
    %877 = vst [vmem:[#allocation2 + $0xa0] sm:$0xff] %v848
    %878 = vst [vmem:[#allocation2 + $0xa8] sm:$0xff] %v850
    %879 = vst [vmem:[#allocation2 + $0xb0] sm:$0xff] %v852
    %880 = vst [vmem:[#allocation2 + $0xb8] sm:$0xff] %v854
    %881 = vst [vmem:[#allocation2 + $0xc0] sm:$0xff] %v856
    // Predicated region
    $region22: #{tpu_custom_call.1} parent=1 // pred_check
      _
    $region23: #{tpu_custom_call.1} parent=1 // pred_check_branch
      %883 = sbr.rel (0) target = $region25
    $region24: #{tpu_custom_call.1} parent=1 // pred_region
      %s885 = ssub.s32 3200, 3200
      %886 = vsyncadd [#allocation3], %s885
      %s887 = sshll.u32 [#allocation2], 4
      %s888 = int_to_ptr.vmem [resolvable:$true] %s887
      %893 = dma.vmem_to_hbm [thread:$0]  %s888, 3200, %s5, [#allocation3], 128, 128, 8
    $region25: #{tpu_custom_call.1} parent=1 // pred_fallthru
      _
    // Predicated region
    $region26: #{tpu_custom_call.1} parent=1 // pred_check
      _
    $region27: #{tpu_custom_call.1} parent=1 // pred_check_branch
      %895 = sbr.rel (0) target = $region29
    $region28: #{tpu_custom_call.1} parent=1 // pred_region
      %896 = dma.done [#allocation3], 3200
    $region29: #{tpu_custom_call.1} parent=1 // pred_fallthru
      _
    %897 = vsyncpa [#allocation3], 1

</llo_original>
